<compile_context>
chip_gen: v5e
topology: v5e:2x2
jax: 0.10.0
libtpu: 0.0.40
codegen_flags: <defaults>
</compile_context>

<pallas_src>
import functools

import jax
import jax.numpy as jnp
from jax.experimental import pallas as pl
from jax.experimental.pallas import tpu as pltpu


_TARGET_BLOCK_BYTES = 2 * 1024 * 1024   # ~2 MiB per block per operand
_VMEM_LIMIT_BYTES = 32 * 1024 * 1024    # safe on every generation's physical VMEM


def _round_up(x, m):
    return (x + m - 1) // m * m


def _scale_kernel(in_ref, out_ref, *, scale):
    # Elementwise VPU op: one streamed input, one streamed output, constant scale.
    out_ref[...] = in_ref[...] * scale


def _pick_row_tile(rows, row_bytes, target_bytes=_TARGET_BLOCK_BYTES):
    """Largest multiple-of-8 row tile that (a) fits the per-block byte budget,
    (b) leaves >= 2 grid steps when there is enough work (megacore), and
    (c) never exceeds the 8-rounded total row count."""
    budget = max(8, (target_bytes // max(row_bytes, 1)) // 8 * 8)
    half = _round_up(max(pl.cdiv(rows, 2), 1), 8)
    cap = _round_up(max(rows, 1), 8)
    return max(8, min(budget, half, cap))


def absolute_positional_embedding(x, emb_weight):
    """Pallas implementation of AbsolutePositionalEmbedding.forward.

    Args:
      x: (batch, seq, ...) - only seq = x.shape[1] is consumed.
      emb_weight: (max_seq_len, dim) embedding table.
    Returns:
      (1, seq, dim) array = emb_weight[:seq] * dim**-0.5, in emb_weight.dtype.
    """
    seq = int(x.shape[1])
    max_seq_len, dim = emb_weight.shape
    assert 0 < seq <= max_seq_len
    dtype = emb_weight.dtype
    itemsize = jnp.dtype(dtype).itemsize
    scale = float(dim) ** -0.5
    kernel = functools.partial(_scale_kernel, scale=scale)
    compiler_params = pltpu.CompilerParams(
        dimension_semantics=("parallel",),
        vmem_limit_bytes=_VMEM_LIMIT_BYTES,
    )

    if dim % 128 == 0:
        # Lane-dense already: tile the first `seq` rows of the table directly.
        # The arange(seq) "gather" degenerates to a contiguous row window that
        # the BlockSpec index_map expresses with zero wrapper-side copies.
        tile_n = _pick_row_tile(seq, dim * itemsize)
        grid = (pl.cdiv(seq, tile_n),)
        out = pl.pallas_call(
            kernel,
            out_shape=jax.ShapeDtypeStruct((seq, dim), dtype),
            grid=grid,
            in_specs=[pl.BlockSpec((tile_n, dim), lambda i: (i, 0))],
            out_specs=pl.BlockSpec((tile_n, dim), lambda i: (i, 0)),
            compiler_params=compiler_params,
        )(emb_weight)
        return out.reshape(1, seq, dim)

    # dim not a multiple of 128 (e.g. dim=32): a (tile, dim) block would waste
    # most of every lane/vreg and force masked partial stores.  The op is
    # elementwise on contiguous memory, so present a lane-dense flattened
    # (rows, 128) view instead (pure layout plumbing) and reshape back.
    n = seq * dim
    lanes = 128
    rows = pl.cdiv(n, lanes)
    tile_rows = _pick_row_tile(rows, lanes * itemsize)
    padded_rows = _round_up(rows, tile_rows)

    flat = emb_weight[:seq].reshape(-1)
    pad = padded_rows * lanes - n
    if pad:
        flat = jnp.pad(flat, (0, pad))
    flat = flat.reshape(padded_rows, lanes)

    grid = (padded_rows // tile_rows,)
    out = pl.pallas_call(
        kernel,
        out_shape=jax.ShapeDtypeStruct((padded_rows, lanes), dtype),
        grid=grid,
        in_specs=[pl.BlockSpec((tile_rows, lanes), lambda i: (i, 0))],
        out_specs=pl.BlockSpec((tile_rows, lanes), lambda i: (i, 0)),
        compiler_params=compiler_params,
    )(flat)
    # '() n d' rearrange + un-pad: wrapper-side glue only.
    return out.reshape(-1)[:n].reshape(1, seq, dim)


if __name__ == "__main__":
    key = jax.random.PRNGKey(0)
    k_emb, k_x, k_emb2, k_x2 = jax.random.split(key, 4)

    # Case 1: module-sized example (narrow dim -> lane-dense flattened path).
    batch, seq, dim, max_seq_len = 2, 8, 32, 16
    emb_weight = jax.random.normal(k_emb, (max_seq_len, dim), dtype=jnp.float32)
    x = jax.random.normal(k_x, (batch, seq, dim), dtype=jnp.float32)
    out = jax.block_until_ready(absolute_positional_embedding(x, emb_weight))
    ref = emb_weight[:seq][None, :, :] * (dim ** (-0.5))
    assert out.shape == (1, seq, dim) and out.dtype == emb_weight.dtype
    assert jnp.allclose(out, ref, atol=1e-6), "mismatch vs reference (flattened path)"

    # Case 2: lane-aligned dim with a ragged row grid (direct streaming path).
    batch2, seq2, dim2, max_seq_len2 = 2, 12, 256, 24
    emb_weight2 = jax.random.normal(k_emb2, (max_seq_len2, dim2), dtype=jnp.float32)
    x2 = jax.random.normal(k_x2, (batch2, seq2, dim2), dtype=jnp.float32)
    out2 = jax.block_until_ready(absolute_positional_embedding(x2, emb_weight2))
    ref2 = emb_weight2[:seq2][None, :, :] * (dim2 ** (-0.5))
    assert out2.shape == (1, seq2, dim2) and out2.dtype == emb_weight2.dtype
    assert jnp.allclose(out2, ref2, atol=1e-6), "mismatch vs reference (direct path)"

    print("KERNEL_OK")
</pallas_src>

<mosaic_0001>
module attributes {stable_mosaic.version = 11 : i64} {
  func.func @_scale_kernel(%arg0: i32, %arg1: memref<8x128xf32, #tpu.memory_space<vmem>>, %arg2: memref<8x128xf32, #tpu.memory_space<vmem>>) attributes {dimension_semantics = [#tpu.dimension_semantics<parallel>], iteration_bounds = array<i64: 1>, scalar_prefetch = 0 : i64, scratch_operands = 0 : i64, tpu.core_type = #tpu.core_type<tc>, window_params = [{transform_indices = @transform_0, window_bounds = array<i64: 8, 128>}, {transform_indices = @transform_1, window_bounds = array<i64: 8, 128>}]} {
    %c0 = arith.constant 0 : index
    %c0_0 = arith.constant 0 : index
    %0 = vector.load %arg1[%c0, %c0_0] : memref<8x128xf32, #tpu.memory_space<vmem>>, vector<8x128xf32>
    %cst = arith.constant 0.176776692 : f32
    %1 = vector.broadcast %cst : f32 to vector<8x128xf32>
    %2 = arith.mulf %0, %1 : vector<8x128xf32>
    %c0_1 = arith.constant 0 : index
    %c0_2 = arith.constant 0 : index
    %3 = vector.load %arg2[%c0_1, %c0_2] : memref<8x128xf32, #tpu.memory_space<vmem>>, vector<8x128xf32>
    tpu.vector_store %arg2[%c0_1, %c0_2], %2 {strides = array<i32>} : memref<8x128xf32, #tpu.memory_space<vmem>>, vector<8x128xf32>,
    return
  }
  func.func @transform_0(%arg0: i32) -> (i32, i32) {
    %c0_i32 = arith.constant 0 : i32
    %c0_i32_0 = arith.constant 0 : i32
    return %arg0, %c0_i32 : i32, i32
  }
  func.func @transform_1(%arg0: i32) -> (i32, i32) {
    %c0_i32 = arith.constant 0 : i32
    %c0_i32_0 = arith.constant 0 : i32
    return %arg0, %c0_i32 : i32, i32
  }
}

</mosaic_0001>

<llo_original>
// kernel: tpu_custom_call.1
$region0: #{tpu_custom_call.1}
  #allocation0 [shape = 'u32[]', space=smem, size = 0x4, offset = 0x4, fixed_abs, tag = 'smem constant byte address 0x4 - core index']
  #allocation1 [shape = 'u32[72,128]{1,0:T(1,128)}', space=vmem, size = 0x9000, scoped, tag = 'internal scratch']
  %s0 = inlined_call_operand.hbm [shape: f32[8,128], index: 0, kind: input, shape index: {}]
  %s1 = inlined_call_operand.hbm [shape: f32[8,128], index: 1, kind: output, shape index: {}]
  %s2 = sld [smem:[#allocation0]]
  $region18: #{tpu_custom_call.1} parent=0
    _
  %s4 = ssub.s32 1, %s2
  %s5 = scalar_select 0, %s4, %s2
  $region1: #{tpu_custom_call.1} parent=0
    #allocation2 [shape = 'u8[4096]{0}', space=vmem, size = 0x1000, scoped, tag = 'input window, operand 0, single buffered']
    #allocation3 [shape = 's32[1]{0}', space=sflag, size = 0x4, scoped, tag = 'scoped memory for tpu_custom_call.1']
    #allocation4 [shape = 's32[1]{0}', space=sflag, size = 0x4, scoped, tag = 'scoped memory for tpu_custom_call.1']
    #allocation5 [shape = 'u8[4096]{0}', space=vmem, size = 0x1000, scoped, tag = 'output window, operand 0, single buffered']
    %6 = vsyncpa [#allocation3], 0
    %7 = vsyncpa [#allocation4], 0
    // Predicated region
    $region2: #{tpu_custom_call.1} parent=1 // pred_check
      _
    $region3: #{tpu_custom_call.1} parent=1 // pred_check_branch
      %9 = sbr.rel (0) target = $region5
    $region4: #{tpu_custom_call.1} parent=1 // pred_region
      %11 = vsyncadd [#allocation3], 0
      %s13 = sshll.u32 %s0, 4
      %s14 = int_to_ptr.hbm [resolvable:$true] %s13
      %s15 = sshll.u32 [#allocation2], 4
      %s16 = int_to_ptr.vmem [resolvable:$true] %s15
      %18 = dma.hbm_to_vmem [thread:$0]  %s14, 128, %s16, [#allocation3]
    $region5: #{tpu_custom_call.1} parent=1 // pred_fallthru
      _
    // Predicated region
    $region6: #{tpu_custom_call.1} parent=1 // pred_check
      _
    $region7: #{tpu_custom_call.1} parent=1 // pred_check_branch
      %20 = sbr.rel (0) target = $region9
    $region8: #{tpu_custom_call.1} parent=1 // pred_region
      %22 = dma.done [#allocation3], 128
    $region9: #{tpu_custom_call.1} parent=1 // pred_fallthru
      _
    %v23 = vld [vmem:[#allocation2] sm:$0xff]
    %v24 = vmul.f32 %v23, 0.17677669
    %25 = vst [vmem:[#allocation5] sm:$0xff] %v24
    // Predicated region
    $region10: #{tpu_custom_call.1} parent=1 // pred_check
      _
    $region11: #{tpu_custom_call.1} parent=1 // pred_check_branch
      %27 = sbr.rel (0) target = $region13
    $region12: #{tpu_custom_call.1} parent=1 // pred_region
      %29 = vsyncadd [#allocation4], 0
      %s31 = sshll.u32 [#allocation5], 4
      %s32 = int_to_ptr.vmem [resolvable:$true] %s31
      %s33 = sshll.u32 %s1, 4
      %s34 = int_to_ptr.hbm [resolvable:$true] %s33
      %36 = dma.vmem_to_hbm [thread:$0]  %s32, 128, %s34, [#allocation4]
    $region13: #{tpu_custom_call.1} parent=1 // pred_fallthru
      _
    // Predicated region
    $region14: #{tpu_custom_call.1} parent=1 // pred_check
      _
    $region15: #{tpu_custom_call.1} parent=1 // pred_check_branch
      %38 = sbr.rel (0) target = $region17
    $region16: #{tpu_custom_call.1} parent=1 // pred_region
      %40 = dma.done [#allocation4], 128
    $region17: #{tpu_custom_call.1} parent=1 // pred_fallthru
      _
    %41 = vsyncpa [#allocation3], 1
    %42 = vsyncpa [#allocation4], 1

</llo_original>
